<compile_context>
chip_gen: v7x
topology: tpu7x:2x2x1
jax: 0.10.0
libtpu: 0.0.40
codegen_flags: <defaults>
</compile_context>

<pallas_src>
import functools
import math

import jax
import jax.numpy as jnp
import numpy as np
from jax.experimental import pallas as pl
from jax.experimental.pallas import tpu as pltpu

F0_MIN = 50.0
F0_MAX = 1100.0
F0_BIN = 256.0
F0_MEL_MIN = 1127.0 * math.log(1.0 + F0_MIN / 700.0)
F0_MEL_MAX = 1127.0 * math.log(1.0 + F0_MAX / 700.0)


def _round_up(x, m):
    return (x + m - 1) // m * m


def _fused_kernel(pf_raw_ref, phone_ref, feats_ref, pitch_ref, pitchf_ref, *, scale):
    """Fused pitch-shift + f0->coarse quantization + 2x nearest time-upsample.

    pf_raw_ref: VMEM (1, 2*tile_T) f32 -- raw rmvpe f0 for this tile's output frames
    phone_ref:  VMEM (tile_T, D)   f32 -- hubert features for this tile
    feats_ref:  VMEM (tile_T, 2, D) f32 -- [t, 0/1, :] = even/odd upsampled frame
    pitch_ref:  VMEM (1, 2*tile_T) i32 -- quantized coarse pitch
    pitchf_ref: VMEM (1, 2*tile_T) f32 -- shifted f0
    """
    # ---- pitch path (lane-dense, frame axis on lanes) ----
    pf = pf_raw_ref[...] * scale                      # pitchf *= 2**(mod/12)
    pitchf_ref[...] = pf

    f0_mel = 1127.0 * jnp.log(1.0 + pf / 700.0)
    scaled = (f0_mel - F0_MEL_MIN) * (F0_BIN - 2.0) / (F0_MEL_MAX - F0_MEL_MIN) + 1.0
    f0_mel = jnp.where(f0_mel > 0.0, scaled, f0_mel)  # f0_mel[f0_mel > 0] = ...
    f0_mel = jnp.where(f0_mel <= 1.0, 1.0, f0_mel)    # f0_mel[f0_mel <= 1] = 1
    f0_mel = jnp.minimum(f0_mel, F0_BIN - 1.0)        # f0_mel[f0_mel > bin-1] = bin-1
    pitch_ref[...] = jnp.clip(jnp.round(f0_mel), 1.0, 255.0).astype(jnp.int32)

    # ---- feats path: F.interpolate(scale_factor=2, nearest) == 2x row repeat ----
    # The reference blend feats*pitchff + feats0*(1-pitchff) is a mathematical
    # identity (feats == feats0), so it is dropped per the performance review.
    ph = phone_ref[...]
    feats_ref[:, 0, :] = ph
    feats_ref[:, 1, :] = ph


def feature_extractor_forward(phone, pitchf_raw, pitch_modification, *, tile_t=256):
    """phone: (T, D) f32 (hubert hidden_states[12], batch squeezed);
       pitchf_raw: (L,) f32 (rmvpe f0), L >= 2*T.
       Returns (feats (1,2T,D) f32, phone_len (1,) i32, pitch (1,2T) i32,
                pitchf (1,2T) f32)."""
    T, D = phone.shape
    L = pitchf_raw.shape[0]
    if L < 2 * T:
        raise ValueError(f"pitchf_raw has {L} frames; need >= 2*T = {2 * T}")

    scale = 2.0 ** (float(pitch_modification) / 12.0)   # baked-in traced constant

    # Tile over T; a single whole-array block for small T, 256-row tiles otherwise.
    tile_T = min(int(tile_t), _round_up(T, 8))
    T_pad = _round_up(T, tile_T)
    L_pad = 2 * T_pad

    phone_f32 = phone.astype(jnp.float32)
    if T_pad != T:
        phone_f32 = jnp.pad(phone_f32, ((0, T_pad - T), (0, 0)))

    pf = pitchf_raw.astype(jnp.float32)
    pf = pf[:L_pad] if L >= L_pad else jnp.pad(pf, (0, L_pad - L))
    pf2d = pf.reshape(1, L_pad)

    kernel = functools.partial(_fused_kernel, scale=scale)

    feats3, pitch, pitchf = pl.pallas_call(
        kernel,
        out_shape=(jax.ShapeDtypeStruct((T_pad, 2, D), jnp.float32),
                   jax.ShapeDtypeStruct((1, L_pad), jnp.int32),
                   jax.ShapeDtypeStruct((1, L_pad), jnp.float32)),
        grid=(T_pad // tile_T,),
        in_specs=[pl.BlockSpec((1, 2 * tile_T), lambda i: (0, i)),
                  pl.BlockSpec((tile_T, D), lambda i: (i, 0))],
        out_specs=(pl.BlockSpec((tile_T, 2, D), lambda i: (i, 0, 0)),
                   pl.BlockSpec((1, 2 * tile_T), lambda i: (0, i)),
                   pl.BlockSpec((1, 2 * tile_T), lambda i: (0, i))),
        compiler_params=pltpu.CompilerParams(
            dimension_semantics=("parallel",),
            vmem_limit_bytes=32 * 1024 * 1024),
    )(pf2d, phone_f32)

    phone_len = 2 * T                           # feats.shape[1] after 2x upsample
    feats = feats3.reshape(2 * T_pad, D)[:phone_len][None]   # (1, 2T, D), contiguous
    pitch = pitch[:, :phone_len]
    pitchf = pitchf[:, :phone_len]
    phone_len_arr = jnp.asarray([phone_len], dtype=jnp.int32)
    return feats, phone_len_arr, pitch, pitchf


if __name__ == "__main__":
    key = jax.random.PRNGKey(0)
    k1, k2, k3 = jax.random.split(key, 3)

    T, D = 8, 128          # small hubert-frame count / hidden dim
    L = 2 * T              # rmvpe f0 frames (2 per hubert frame)

    phone = jax.random.normal(k1, (T, D), dtype=jnp.float32)
    f0 = jax.random.uniform(k2, (L,), minval=80.0, maxval=500.0, dtype=jnp.float32)
    voiced = jax.random.uniform(k3, (L,)) > 0.3
    pitchf_raw = jnp.where(voiced, f0, 0.0)    # zeros = unvoiced frames
    pitch_modification = 2.0                   # +2 semitones

    feats, phone_len, pitch, pitchf = feature_extractor_forward(
        phone, pitchf_raw, pitch_modification)
    jax.block_until_ready((feats, phone_len, pitch, pitchf))

    # shape / dtype checks
    assert feats.shape == (1, 2 * T, D) and feats.dtype == jnp.float32
    assert phone_len.shape == (1,) and phone_len.dtype == jnp.int32
    assert pitch.shape == (1, 2 * T) and pitch.dtype == jnp.int32
    assert pitchf.shape == (1, 2 * T) and pitchf.dtype == jnp.float32
    assert int(phone_len[0]) == 2 * T
    assert int(pitch.min()) >= 1 and int(pitch.max()) <= 255

    # numeric reference check (pure numpy)
    scale = 2.0 ** (pitch_modification / 12.0)
    pf_ref = np.asarray(pitchf_raw)[: 2 * T] * scale
    mel = 1127.0 * np.log(1.0 + pf_ref / 700.0)
    mel = np.where(mel > 0.0,
                   (mel - F0_MEL_MIN) * (F0_BIN - 2.0) / (F0_MEL_MAX - F0_MEL_MIN) + 1.0,
                   mel)
    mel = np.where(mel <= 1.0, 1.0, mel)
    mel = np.minimum(mel, F0_BIN - 1.0)
    pitch_ref = np.clip(np.round(mel), 1, 255).astype(np.int32)
    feats_ref = np.repeat(np.asarray(phone, dtype=np.float32), 2, axis=0)

    assert np.allclose(np.asarray(pitchf)[0], pf_ref, rtol=1e-5, atol=1e-3)
    assert int(np.max(np.abs(np.asarray(pitch)[0].astype(np.int64)
                             - pitch_ref.astype(np.int64)))) <= 1
    assert np.allclose(np.asarray(feats)[0], feats_ref)

    print("KERNEL_OK")
</pallas_src>

<mosaic_0001>
module attributes {stable_mosaic.version = 11 : i64} {
  func.func @_fused_kernel(%arg0: i32, %arg1: memref<1x16xf32, #tpu.memory_space<vmem>>, %arg2: memref<8x128xf32, #tpu.memory_space<vmem>>, %arg3: memref<8x2x128xf32, #tpu.memory_space<vmem>>, %arg4: memref<1x16xi32, #tpu.memory_space<vmem>>, %arg5: memref<1x16xf32, #tpu.memory_space<vmem>>) attributes {dimension_semantics = [#tpu.dimension_semantics<parallel>], iteration_bounds = array<i64: 1>, scalar_prefetch = 0 : i64, scratch_operands = 0 : i64, tpu.core_type = #tpu.core_type<tc>, window_params = [{transform_indices = @transform_0, window_bounds = array<i64: 1, 16>}, {transform_indices = @transform_1, window_bounds = array<i64: 8, 128>}, {transform_indices = @transform_2, window_bounds = array<i64: 8, 2, 128>}, {transform_indices = @transform_3, window_bounds = array<i64: 1, 16>}, {transform_indices = @transform_4, window_bounds = array<i64: 1, 16>}]} {
    %c0 = arith.constant 0 : index
    %c0_0 = arith.constant 0 : index
    %0 = vector.load %arg1[%c0, %c0_0] : memref<1x16xf32, #tpu.memory_space<vmem>>, vector<1x16xf32>
    %cst = arith.constant 1.12246203 : f32
    %1 = vector.broadcast %cst : f32 to vector<1x16xf32>
    %2 = arith.mulf %0, %1 : vector<1x16xf32>
    %c0_1 = arith.constant 0 : index
    %c0_2 = arith.constant 0 : index
    %3 = vector.load %arg5[%c0_1, %c0_2] : memref<1x16xf32, #tpu.memory_space<vmem>>, vector<1x16xf32>
    tpu.vector_store %arg5[%c0_1, %c0_2], %2 {strides = array<i32>} : memref<1x16xf32, #tpu.memory_space<vmem>>, vector<1x16xf32>,
    %cst_3 = arith.constant 7.000000e+02 : f32
    %4 = vector.broadcast %cst_3 : f32 to vector<1x16xf32>
    %5 = arith.divf %2, %4 : vector<1x16xf32>
    %cst_4 = arith.constant 1.000000e+00 : f32
    %6 = vector.broadcast %cst_4 : f32 to vector<1x16xf32>
    %7 = arith.addf %6, %5 : vector<1x16xf32>
    %8 = math.log %7 : vector<1x16xf32>
    %cst_5 = arith.constant 1.127000e+03 : f32
    %9 = vector.broadcast %cst_5 : f32 to vector<1x16xf32>
    %10 = arith.mulf %9, %8 : vector<1x16xf32>
    %cst_6 = arith.constant 77.7549667 : f32
    %11 = vector.broadcast %cst_6 : f32 to vector<1x16xf32>
    %12 = arith.subf %10, %11 : vector<1x16xf32>
    %cst_7 = arith.constant 2.540000e+02 : f32
    %13 = vector.broadcast %cst_7 : f32 to vector<1x16xf32>
    %14 = arith.mulf %12, %13 : vector<1x16xf32>
    %cst_8 = arith.constant 986.653259 : f32
    %15 = vector.broadcast %cst_8 : f32 to vector<1x16xf32>
    %16 = arith.divf %14, %15 : vector<1x16xf32>
    %cst_9 = arith.constant 1.000000e+00 : f32
    %17 = vector.broadcast %cst_9 : f32 to vector<1x16xf32>
    %18 = arith.addf %16, %17 : vector<1x16xf32>
    %cst_10 = arith.constant 0.000000e+00 : f32
    %19 = vector.broadcast %cst_10 : f32 to vector<1x16xf32>
    %20 = arith.cmpf ogt, %10, %19 : vector<1x16xf32>
    %21 = arith.select %20, %18, %10 : vector<1x16xi1>, vector<1x16xf32>
    %cst_11 = arith.constant 1.000000e+00 : f32
    %22 = vector.broadcast %cst_11 : f32 to vector<1x16xf32>
    %23 = arith.cmpf ole, %21, %22 : vector<1x16xf32>
    %cst_12 = arith.constant 1.000000e+00 : f32
    %24 = vector.broadcast %cst_12 : f32 to vector<1x16xf32>
    %25 = arith.select %23, %24, %21 : vector<1x16xi1>, vector<1x16xf32>
    %cst_13 = arith.constant 2.550000e+02 : f32
    %26 = vector.broadcast %cst_13 : f32 to vector<1x16xf32>
    %27 = arith.minimumf %25, %26 : vector<1x16xf32>
    %28 = math.roundeven %27 : vector<1x16xf32>
    %cst_14 = arith.constant 1.000000e+00 : f32
    %cst_15 = arith.constant 2.550000e+02 : f32
    %29 = vector.broadcast %cst_14 : f32 to vector<1x16xf32>
    %30 = arith.maximumf %29, %28 : vector<1x16xf32>
    %31 = vector.broadcast %cst_15 : f32 to vector<1x16xf32>
    %32 = arith.minimumf %31, %30 : vector<1x16xf32>
    %33 = arith.fptosi %32 : vector<1x16xf32> to vector<1x16xi32>
    %c0_16 = arith.constant 0 : index
    %c0_17 = arith.constant 0 : index
    %34 = vector.load %arg4[%c0_16, %c0_17] : memref<1x16xi32, #tpu.memory_space<vmem>>, vector<1x16xi32>
    tpu.vector_store %arg4[%c0_16, %c0_17], %33 {strides = array<i32>} : memref<1x16xi32, #tpu.memory_space<vmem>>, vector<1x16xi32>,
    %c0_18 = arith.constant 0 : index
    %c0_19 = arith.constant 0 : index
    %35 = vector.load %arg2[%c0_18, %c0_19] : memref<8x128xf32, #tpu.memory_space<vmem>>, vector<8x128xf32>
    %c0_20 = arith.constant 0 : index
    %c0_21 = arith.constant 0 : index
    %c0_22 = arith.constant 0 : index
    %36 = vector.load %arg3[%c0_20, %c0_21, %c0_22] : memref<8x2x128xf32, #tpu.memory_space<vmem>>, vector<8x1x128xf32>
    %37 = vector.shape_cast %36 : vector<8x1x128xf32> to vector<8x128xf32>
    %38 = vector.shape_cast %35 : vector<8x128xf32> to vector<8x1x128xf32>
    tpu.vector_store %arg3[%c0_20, %c0_21, %c0_22], %38 {strides = array<i32>} : memref<8x2x128xf32, #tpu.memory_space<vmem>>, vector<8x1x128xf32>,
    %c0_23 = arith.constant 0 : index
    %c1 = arith.constant 1 : index
    %c0_24 = arith.constant 0 : index
    %39 = vector.load %arg3[%c0_23, %c1, %c0_24] : memref<8x2x128xf32, #tpu.memory_space<vmem>>, vector<8x1x128xf32>
    %40 = vector.shape_cast %39 : vector<8x1x128xf32> to vector<8x128xf32>
    %41 = vector.shape_cast %35 : vector<8x128xf32> to vector<8x1x128xf32>
    tpu.vector_store %arg3[%c0_23, %c1, %c0_24], %41 {strides = array<i32>} : memref<8x2x128xf32, #tpu.memory_space<vmem>>, vector<8x1x128xf32>,
    return
  }
  func.func @transform_0(%arg0: i32) -> (i32, i32) {
    %c0_i32 = arith.constant 0 : i32
    %c0_i32_0 = arith.constant 0 : i32
    return %c0_i32, %arg0 : i32, i32
  }
  func.func @transform_1(%arg0: i32) -> (i32, i32) {
    %c0_i32 = arith.constant 0 : i32
    %c0_i32_0 = arith.constant 0 : i32
    return %arg0, %c0_i32 : i32, i32
  }
  func.func @transform_2(%arg0: i32) -> (i32, i32, i32) {
    %c0_i32 = arith.constant 0 : i32
    %c0_i32_0 = arith.constant 0 : i32
    %c0_i32_1 = arith.constant 0 : i32
    return %arg0, %c0_i32, %c0_i32_0 : i32, i32, i32
  }
  func.func @transform_3(%arg0: i32) -> (i32, i32) {
    %c0_i32 = arith.constant 0 : i32
    %c0_i32_0 = arith.constant 0 : i32
    return %c0_i32, %arg0 : i32, i32
  }
  func.func @transform_4(%arg0: i32) -> (i32, i32) {
    %c0_i32 = arith.constant 0 : i32
    %c0_i32_0 = arith.constant 0 : i32
    return %c0_i32, %arg0 : i32, i32
  }
}

</mosaic_0001>

<llo_original>
// kernel: tpu_custom_call.1
$region0: #{tpu_custom_call.1}
  #allocation0 [shape = 'u32[]', space=smem, size = 0x4, offset = 0x4, fixed_abs, tag = 'smem constant byte address 0x4 - core index']
  #allocation1 [shape = 'u32[144,128]{1,0:T(1,128)}', space=vmem, size = 0x12000, scoped, tag = 'internal scratch']
  %s0 = inlined_call_operand.hbm [shape: f32[1,16], index: 0, kind: input, shape index: {}]
  %s1 = inlined_call_operand.hbm [shape: f32[8,128], index: 1, kind: input, shape index: {}]
  %s2 = inlined_call_operand.hbm [shape: f32[8,2,128], index: 2, kind: output, shape index: {0}]
  %s3 = inlined_call_operand.hbm [shape: s32[1,16], index: 3, kind: output, shape index: {1}]
  %s4 = inlined_call_operand.hbm [shape: f32[1,16], index: 4, kind: output, shape index: {2}]
  %5 = xla_tuple %s2, %s3, %s4
  %s6 = sld [smem:[#allocation0]]
  $region42: #{tpu_custom_call.1} parent=0
    _
  %s8 = ssub.s32 1, %s6
  %s9 = scalar_select 0, %s8, %s6
  $region1: #{tpu_custom_call.1} parent=0
    #allocation2 [shape = 'u8[512]{0}', space=vmem, size = 0x400, scoped, tag = 'input window, operand 0, single buffered']
    #allocation3 [shape = 's32[1]{0}', space=sflag, size = 0x4, scoped, tag = 'scoped memory for tpu_custom_call.1']
    #allocation4 [shape = 's32[1]{0}', space=sflag, size = 0x4, scoped, tag = 'scoped memory for tpu_custom_call.1']
    #allocation5 [shape = 'u8[4096]{0}', space=vmem, size = 0x1000, scoped, tag = 'input window, operand 1, single buffered']
    #allocation6 [shape = 's32[1]{0}', space=sflag, size = 0x4, scoped, tag = 'scoped memory for tpu_custom_call.1']
    #allocation7 [shape = 'u8[8192]{0}', space=vmem, size = 0x2000, scoped, tag = 'output window, operand 0, single buffered']
    #allocation8 [shape = 'u8[512]{0}', space=vmem, size = 0x400, scoped, tag = 'output window, operand 1, single buffered']
    #allocation9 [shape = 's32[1]{0}', space=sflag, size = 0x4, scoped, tag = 'scoped memory for tpu_custom_call.1']
    #allocation10 [shape = 'u8[512]{0}', space=vmem, size = 0x400, scoped, tag = 'output window, operand 2, single buffered']
    %10 = vsyncpa [#allocation3], 0
    %11 = vsyncpa [#allocation6], 0
    %12 = vsyncpa [#allocation4], 0
    %13 = vsyncpa [#allocation9], 0
    // Predicated region
    $region2: #{tpu_custom_call.1} parent=1 // pred_check
      _
    $region3: #{tpu_custom_call.1} parent=1 // pred_check_branch
      %15 = sbr.rel (0) target = $region5
    $region4: #{tpu_custom_call.1} parent=1 // pred_region
      %s17 = ssub.s32 16, 16
      %18 = vsyncadd [#allocation3], %s17
      %s20 = sshll.u32 [#allocation2], 4
      %s21 = int_to_ptr.vmem [resolvable:$true] %s20
      %23 = dma.hbm_to_vmem [thread:$0]  %s0, 16, %s21, [#allocation3]
    $region5: #{tpu_custom_call.1} parent=1 // pred_fallthru
      _
    // Predicated region
    $region6: #{tpu_custom_call.1} parent=1 // pred_check
      _
    $region7: #{tpu_custom_call.1} parent=1 // pred_check_branch
      %25 = sbr.rel (0) target = $region9
    $region8: #{tpu_custom_call.1} parent=1 // pred_region
      %s27 = ssub.s32 128, 128
      %28 = vsyncadd [#allocation6], %s27
      %s30 = sshll.u32 [#allocation5], 4
      %s31 = int_to_ptr.vmem [resolvable:$true] %s30
      %33 = dma.hbm_to_vmem [thread:$0]  %s1, 128, %s31, [#allocation6]
    $region9: #{tpu_custom_call.1} parent=1 // pred_fallthru
      _
    // Predicated region
    $region10: #{tpu_custom_call.1} parent=1 // pred_check
      _
    $region11: #{tpu_custom_call.1} parent=1 // pred_check_branch
      %35 = sbr.rel (0) target = $region13
    $region12: #{tpu_custom_call.1} parent=1 // pred_region
      %36 = dma.done [#allocation3], 16
    $region13: #{tpu_custom_call.1} parent=1 // pred_fallthru
      _
    // Predicated region
    $region14: #{tpu_custom_call.1} parent=1 // pred_check
      _
    $region15: #{tpu_custom_call.1} parent=1 // pred_check_branch
      %38 = sbr.rel (0) target = $region17
    $region16: #{tpu_custom_call.1} parent=1 // pred_region
      %39 = dma.done [#allocation6], 128
    $region17: #{tpu_custom_call.1} parent=1 // pred_fallthru
      _
    %v40 = vld [vmem:[#allocation2] sm:$0x1]
    %v41 = vmul.f32 %v40, 1.122462
    %vm42 = vcmask 122880
    %43 = vst.msk [vmem:[#allocation10] sm:$0x1] %vm42, %v41
    %v44 = vrcp.pop 700.0
    %v45 = vmul.f32 %v41, %v44
    %v46 = vadd.f32 %v45, 1.0
    %v47 = vlog2.pop %v46
    %v48 = vmul.f32 %v47, 0.6931472
    %v49 = vmul.f32 %v48, 1127.0
    %v50 = vsub.f32 %v49, 77.75497
    %v51 = vmul.f32 %v50, 254.0
    %v52 = vrcp.pop 986.65326
    %v53 = vmul.f32 %v51, %v52
    %v54 = vadd.f32 %v53, 1.0
    %vm55 = vcmp.gt.f32.partialorder %v49, 0.0
    %v56 = vsel %vm55, %v54, %v49
    %vm57 = vcmp.le.f32.partialorder %v56, 1.0
    %v58 = vsel %vm57, 1.0, %v56
    %v59 = vmin.f32 %v58, 255.0
    %v60 = vround.ne.pseudo %v59
    %v61 = vmax.f32 %v60, 1.0
    %v62 = vmin.f32 %v61, 255.0
    %v63 = vcvt.f32.s32.to.zero.pseudo %v62
    %64 = vst.msk [vmem:[#allocation8] sm:$0x1] %vm42, %v63
    %v65 = vld [vmem:[#allocation5] sm:$0xff]
    %v67 = vcombine.high %v65, %v65
    %v69 = vunpack.c.l.s4 1966171168
    %v70 = vunpack.c.0.s8 %v69
    %v71 = vlaneseq
    %v72 = vshrl.u32 %v71, 7
    %v73 = vsub.s32 %v70, %v72
    %v74 = vrot.slane %v65, %v73
    %v76 = vunpack.c.l.s4 1966171168
    %v77 = vunpack.c.0.s8 %v76
    %v78 = vlaneseq
    %v79 = vshrl.u32 %v78, 7
    %v80 = vsub.s32 %v77, %v79
    %v81 = vrot.slane %v67, %v80
    %v82 = vcombine.high %v74, %v74
    %v83 = vcombine.high %v81, %v81
    %v85 = vunpack.c.l.s4 1966171168
    %v86 = vunpack.c.0.s8 %v85
    %v87 = vlaneseq
    %v88 = vshrl.u32 %v87, 7
    %v89 = vsub.s32 %v86, %v88
    %v90 = vrot.slane %v74, %v89
    %v92 = vunpack.c.l.s4 1966171168
    %v93 = vunpack.c.0.s8 %v92
    %v94 = vlaneseq
    %v95 = vshrl.u32 %v94, 7
    %v96 = vsub.s32 %v93, %v95
    %v97 = vrot.slane %v81, %v96
    %v99 = vunpack.c.l.s4 1966171168
    %v100 = vunpack.c.0.s8 %v99
    %v101 = vlaneseq
    %v102 = vshrl.u32 %v101, 7
    %v103 = vsub.s32 %v100, %v102
    %v104 = vrot.slane %v82, %v103
    %v106 = vunpack.c.l.s4 1966171168
    %v107 = vunpack.c.0.s8 %v106
    %v108 = vlaneseq
    %v109 = vshrl.u32 %v108, 7
    %v110 = vsub.s32 %v107, %v109
    %v111 = vrot.slane %v83, %v110
    %v112 = vcombine.high %v90, %v90
    %v113 = vcombine.high %v97, %v97
    %v114 = vcombine.high %v104, %v104
    %v115 = vcombine.high %v111, %v111
    %124 = vst [vmem:[#allocation7] sm:$0x1] %v90
    %125 = vst [vmem:[#allocation7 + $0x2] sm:$0x1] %v104
    %126 = vst [vmem:[#allocation7 + $0x4] sm:$0x1] %v112
    %127 = vst [vmem:[#allocation7 + $0x6] sm:$0x1] %v114
    %128 = vst [vmem:[#allocation7 + $0x8] sm:$0x1] %v97
    %129 = vst [vmem:[#allocation7 + $0xa] sm:$0x1] %v111
    %130 = vst [vmem:[#allocation7 + $0xc] sm:$0x1] %v113
    %131 = vst [vmem:[#allocation7 + $0xe] sm:$0x1] %v115
    %132 = vst [vmem:[#allocation7 + $0x1] sm:$0x1] %v90
    %133 = vst [vmem:[#allocation7 + $0x3] sm:$0x1] %v104
    %134 = vst [vmem:[#allocation7 + $0x5] sm:$0x1] %v112
    %135 = vst [vmem:[#allocation7 + $0x7] sm:$0x1] %v114
    %136 = vst [vmem:[#allocation7 + $0x9] sm:$0x1] %v97
    %137 = vst [vmem:[#allocation7 + $0xb] sm:$0x1] %v111
    %138 = vst [vmem:[#allocation7 + $0xd] sm:$0x1] %v113
    %139 = vst [vmem:[#allocation7 + $0xf] sm:$0x1] %v115
    // Predicated region
    $region18: #{tpu_custom_call.1} parent=1 // pred_check
      _
    $region19: #{tpu_custom_call.1} parent=1 // pred_check_branch
      %141 = sbr.rel (0) target = $region21
    $region20: #{tpu_custom_call.1} parent=1 // pred_region
      %s143 = ssub.s32 256, 256
      %144 = vsyncadd [#allocation4], %s143
      %s145 = sshll.u32 [#allocation7], 4
      %s146 = int_to_ptr.vmem [resolvable:$true] %s145
      %151 = dma.vmem_to_hbm [thread:$0]  %s146, 256, %s2, [#allocation4], 32, 32, 2
    $region21: #{tpu_custom_call.1} parent=1 // pred_fallthru
      _
    // Predicated region
    $region22: #{tpu_custom_call.1} parent=1 // pred_check
      _
    $region23: #{tpu_custom_call.1} parent=1 // pred_check_branch
      %153 = sbr.rel (0) target = $region25
    $region24: #{tpu_custom_call.1} parent=1 // pred_region
      %s155 = ssub.s32 16, 16
      %156 = vsyncadd [#allocation9], %s155
      %s158 = sshll.u32 [#allocation8], 4
      %s159 = int_to_ptr.vmem [resolvable:$true] %s158
      %161 = dma.vmem_to_hbm [thread:$0]  %s159, 16, %s3, [#allocation9]
    $region25: #{tpu_custom_call.1} parent=1 // pred_fallthru
      _
    // Predicated region
    $region26: #{tpu_custom_call.1} parent=1 // pred_check
      _
    $region27: #{tpu_custom_call.1} parent=1 // pred_check_branch
      %163 = sbr.rel (0) target = $region29
    $region28: #{tpu_custom_call.1} parent=1 // pred_region
      %s165 = ssub.s32 16, 16
      %166 = vsyncadd [#allocation9], %s165
      %s168 = sshll.u32 [#allocation10], 4
      %s169 = int_to_ptr.vmem [resolvable:$true] %s168
      %171 = dma.vmem_to_hbm [thread:$0]  %s169, 16, %s4, [#allocation9]
    $region29: #{tpu_custom_call.1} parent=1 // pred_fallthru
      _
    // Predicated region
    $region30: #{tpu_custom_call.1} parent=1 // pred_check
      _
    $region31: #{tpu_custom_call.1} parent=1 // pred_check_branch
      %173 = sbr.rel (0) target = $region33
    $region32: #{tpu_custom_call.1} parent=1 // pred_region
      %174 = dma.done [#allocation4], 256
    $region33: #{tpu_custom_call.1} parent=1 // pred_fallthru
      _
    // Predicated region
    $region34: #{tpu_custom_call.1} parent=1 // pred_check
      _
    $region35: #{tpu_custom_call.1} parent=1 // pred_check_branch
      %176 = sbr.rel (0) target = $region37
    $region36: #{tpu_custom_call.1} parent=1 // pred_region
      %177 = dma.done [#allocation9], 16
    $region37: #{tpu_custom_call.1} parent=1 // pred_fallthru
      _
    // Predicated region
    $region38: #{tpu_custom_call.1} parent=1 // pred_check
      _
    $region39: #{tpu_custom_call.1} parent=1 // pred_check_branch
      %179 = sbr.rel (0) target = $region41
    $region40: #{tpu_custom_call.1} parent=1 // pred_region
      %180 = dma.done [#allocation9], 16
    $region41: #{tpu_custom_call.1} parent=1 // pred_fallthru
      _
    %181 = vsyncpa [#allocation3], 1
    %182 = vsyncpa [#allocation6], 1
    %183 = vsyncpa [#allocation4], 1
    %184 = vsyncpa [#allocation9], 1

</llo_original>
